<compile_context>
chip_gen: v7x
topology: tpu7x:2x2x1
jax: 0.10.0
libtpu: 0.0.40
codegen_flags: <defaults>
</compile_context>

<pallas_src>
import jax
import jax.numpy as jnp
from jax.experimental import pallas as pl
from jax.experimental.pallas import tpu as pltpu

F_IN = 100         # real flattened feature width (10 * 10)
F_PAD = 128        # hidden feature axes padded 100 -> 128 lanes
N_OUT = 8          # final layer kept 8 lanes wide (only column 0 is real)
TILE_B_MAX = 2048  # batch tile (review: raised from 512); small vs scoped VMEM


def _round_up(x, m):
    return (x + m - 1) // m * m


# ---------------------------------------------------------------------------
# Kernel: whole network on one (tile_b, 100) batch tile.
# ---------------------------------------------------------------------------
def fc_netz_kernel(x_ref, w1_ref, w23_ref, w4_ref, b123_ref, b4_ref, o_ref):
    cdt = w23_ref.dtype                      # streaming/compute dtype (f32 or bf16)
    x = x_ref[...]                                                    # (T, 100)

    # lin1 (folded block-diagonal, K=100 -> 128 cols) + relu
    h = jnp.dot(x, w1_ref[...], preferred_element_type=jnp.float32) + b123_ref[0]
    h = jnp.maximum(h, 0.0).astype(cdt)

    # lin2 + relu
    h = jnp.dot(h, w23_ref[0], preferred_element_type=jnp.float32) + b123_ref[1]
    h = jnp.maximum(h, 0.0).astype(cdt)

    # TODO(synk): nn.Dropout(0.2) is identity at inference; training-mode
    # stochastic dropout (pltpu.prng_seed / prng_random_bits) not implemented.

    # lin3 + relu
    h = jnp.dot(h, w23_ref[1], preferred_element_type=jnp.float32) + b123_ref[2]
    h = jnp.maximum(h, 0.0).astype(cdt)

    # lin4 (rhs only 8 lanes wide; column 0 real) + sigmoid, direct store
    z = jnp.dot(h, w4_ref[...], preferred_element_type=jnp.float32) + b4_ref[...]
    o_ref[...] = jax.nn.sigmoid(z)                                    # (T, 8)


# ---------------------------------------------------------------------------
# Wrapper: weight folding/packing + batch-tiled pallas_call.
# ---------------------------------------------------------------------------
def fc_netz_forward(x, params, *, tile_b=None, use_bf16=False):
    (w1, b1), (w2, b2), (w3, b3), (w4, b4) = params
    B = x.shape[0]
    cdt = jnp.bfloat16 if use_bf16 else jnp.float32

    # ---- weight folding / padding / stacking (tiny, plain JAX) ----
    w1_bd = jnp.kron(jnp.eye(10, dtype=jnp.float32), w1.T.astype(jnp.float32))  # (100,100)
    W1 = jnp.pad(w1_bd, ((0, 0), (0, F_PAD - F_IN))).astype(cdt)                # (100,128)
    W23 = jnp.stack([
        jnp.pad(w2.T, ((0, F_PAD - F_IN), (0, F_PAD - F_IN))),
        jnp.pad(w3.T, ((0, F_PAD - F_IN), (0, F_PAD - F_IN))),
    ]).astype(cdt)                                                               # (2,128,128)
    W4 = jnp.pad(w4.T, ((0, F_PAD - F_IN), (0, N_OUT - 1))).astype(cdt)         # (128,8)
    B123 = jnp.stack([
        jnp.pad(jnp.tile(b1, 10), (0, F_PAD - F_IN)),
        jnp.pad(b2, (0, F_PAD - F_IN)),
        jnp.pad(b3, (0, F_PAD - F_IN)),
    ]).astype(jnp.float32).reshape(3, 1, F_PAD)                                  # (3,1,128)
    B4 = jnp.pad(b4, (0, N_OUT - 1)).astype(jnp.float32).reshape(1, N_OUT)      # (1,8)

    # ---- batch tiling ----
    b128 = _round_up(max(B, 1), 128)
    if tile_b is None:
        tile_b = min(TILE_B_MAX, b128)
        # v7x: guarantee >= 2 grid steps so the "parallel" batch axis can be
        # sharded over both TensorCores (no-op on v5e/v6e).
        if b128 >= 2 * 128 and tile_b >= b128:
            tile_b = _round_up(pl.cdiv(b128, 2), 128)
    tile_b = max(128, _round_up(tile_b, 128))
    b_pad = _round_up(b128, tile_b)
    num_tiles = b_pad // tile_b

    # x.view(-1, 100); ONLY the batch axis is padded.  No feature-dim pad copy
    # in HBM: the kernel streams 400 B/row and dots with K=100 directly.
    x2 = x.reshape(B, F_IN).astype(cdt)
    if b_pad != B:
        x2 = jnp.pad(x2, ((0, b_pad - B), (0, 0)))

    cp = dict(dimension_semantics=("parallel",))
    if tile_b > 1024:
        # Insurance for v5e's 16 MiB default scoped-VMEM limit at large tiles.
        cp["vmem_limit_bytes"] = 48 * 1024 * 1024

    const2 = lambda i: (0, 0)
    const3 = lambda i: (0, 0, 0)
    out = pl.pallas_call(
        fc_netz_kernel,
        out_shape=jax.ShapeDtypeStruct((b_pad, N_OUT), jnp.float32),
        grid=(num_tiles,),
        in_specs=[
            pl.BlockSpec((tile_b, F_IN), lambda i: (i, 0)),   # x tile (streamed)
            pl.BlockSpec((F_IN, F_PAD), const2),              # W1 (block-diag fold)
            pl.BlockSpec((2, F_PAD, F_PAD), const3),          # W2, W3 stacked
            pl.BlockSpec((F_PAD, N_OUT), const2),             # W4 (8 cols, col 0 real)
            pl.BlockSpec((3, 1, F_PAD), const3),              # b1..b3 stacked
            pl.BlockSpec((1, N_OUT), const2),                 # b4
        ],
        out_specs=pl.BlockSpec((tile_b, N_OUT), lambda i: (i, 0)),
        compiler_params=pltpu.CompilerParams(**cp),
    )(x2, W1, W23, W4, B123, B4)

    # Column 0 of the (b_pad, 8) slab holds the real sigmoid outputs.
    return out[:B, 0:1]


# ---------------------------------------------------------------------------
# Pure-JAX reference (mirrors the PyTorch forward, inference mode).
# ---------------------------------------------------------------------------
def fc_netz_reference(x, params):
    (w1, b1), (w2, b2), (w3, b3), (w4, b4) = params
    h = jax.nn.relu(jnp.einsum("brf,of->bro", x, w1) + b1)
    h = h.reshape(x.shape[0], 100)
    h = jax.nn.relu(h @ w2.T + b2)
    h = jax.nn.relu(h @ w3.T + b3)
    return jax.nn.sigmoid(h @ w4.T + b4)


# ---------------------------------------------------------------------------
# Parameter init (deterministic, mirrors PyTorch nn.Linear default init).
# ---------------------------------------------------------------------------
def init_params(key):
    def linear(kw, kb, fan_in, fan_out):
        bound = 1.0 / (fan_in ** 0.5)
        w = jax.random.uniform(kw, (fan_out, fan_in), jnp.float32, -bound, bound)
        b = jax.random.uniform(kb, (fan_out,), jnp.float32, -bound, bound)
        return w, b

    ks = jax.random.split(key, 8)
    w1, b1 = linear(ks[0], ks[1], 10, 10)     # lin1: Linear(10, 10)
    w2, b2 = linear(ks[2], ks[3], 100, 100)   # lin2: Linear(100, 100)
    w3, b3 = linear(ks[4], ks[5], 100, 100)   # lin3: Linear(100, 100)
    w4, b4 = linear(ks[6], ks[7], 100, 1)     # lin4: Linear(100, 1)
    return (w1, b1), (w2, b2), (w3, b3), (w4, b4)


if __name__ == "__main__":
    key = jax.random.PRNGKey(0)
    kx, kx2, kp = jax.random.split(key, 3)
    params = init_params(kp)

    # Small check (single tile).
    B = 2
    x = jax.random.normal(kx, (B, 10, 10), dtype=jnp.float32)
    out = jax.block_until_ready(fc_netz_forward(x, params))
    ref = jax.block_until_ready(fc_netz_reference(x, params))
    assert out.shape == (B, 1)
    assert bool(jnp.all(jnp.isfinite(out)))
    assert bool(jnp.allclose(out, ref, atol=1e-5, rtol=1e-5))

    # Ragged-batch / multi-tile check (exercises >=2 grid steps + batch pad crop).
    B2 = 300
    xb = jax.random.normal(kx2, (B2, 10, 10), dtype=jnp.float32)
    out2 = jax.block_until_ready(fc_netz_forward(xb, params))
    ref2 = jax.block_until_ready(fc_netz_reference(xb, params))
    assert out2.shape == (B2, 1)
    assert bool(jnp.all(jnp.isfinite(out2)))
    assert bool(jnp.allclose(out2, ref2, atol=1e-5, rtol=1e-5))

    print("KERNEL_OK")
</pallas_src>

<mosaic_0001>
module attributes {stable_mosaic.version = 11 : i64} {
  func.func @fc_netz_kernel(%arg0: i32, %arg1: memref<128x100xf32, #tpu.memory_space<vmem>>, %arg2: memref<100x128xf32, #tpu.memory_space<vmem>>, %arg3: memref<2x128x128xf32, #tpu.memory_space<vmem>>, %arg4: memref<128x8xf32, #tpu.memory_space<vmem>>, %arg5: memref<3x1x128xf32, #tpu.memory_space<vmem>>, %arg6: memref<1x8xf32, #tpu.memory_space<vmem>>, %arg7: memref<128x8xf32, #tpu.memory_space<vmem>>) attributes {dimension_semantics = [#tpu.dimension_semantics<parallel>], iteration_bounds = array<i64: 1>, scalar_prefetch = 0 : i64, scratch_operands = 0 : i64, tpu.core_type = #tpu.core_type<tc>, window_params = [{transform_indices = @transform_0, window_bounds = array<i64: 128, 100>}, {pipeline_mode = #tpu.pipeline_mode<synchronous>, transform_indices = @transform_1, window_bounds = array<i64: 100, 128>}, {pipeline_mode = #tpu.pipeline_mode<synchronous>, transform_indices = @transform_2, window_bounds = array<i64: 2, 128, 128>}, {pipeline_mode = #tpu.pipeline_mode<synchronous>, transform_indices = @transform_3, window_bounds = array<i64: 128, 8>}, {pipeline_mode = #tpu.pipeline_mode<synchronous>, transform_indices = @transform_4, window_bounds = array<i64: 3, 1, 128>}, {pipeline_mode = #tpu.pipeline_mode<synchronous>, transform_indices = @transform_5, window_bounds = array<i64: 1, 8>}, {transform_indices = @transform_6, window_bounds = array<i64: 128, 8>}]} {
    %c0 = arith.constant 0 : index
    %c0_0 = arith.constant 0 : index
    %0 = vector.load %arg1[%c0, %c0_0] : memref<128x100xf32, #tpu.memory_space<vmem>>, vector<128x100xf32>
    %c0_1 = arith.constant 0 : index
    %c0_2 = arith.constant 0 : index
    %1 = vector.load %arg2[%c0_1, %c0_2] : memref<100x128xf32, #tpu.memory_space<vmem>>, vector<100x128xf32>
    %cst = arith.constant dense<0.000000e+00> : vector<128x128xf32>
    %2 = tpu.matmul %0, %1, %cst {dimension_numbers = #tpu.dot_dimension_numbers<[1], [0], [0], [1], [0, 0, 1, 1], [], []>} : vector<128x100xf32>, vector<100x128xf32>, vector<128x128xf32> -> vector<128x128xf32>
    %c0_3 = arith.constant 0 : index
    %c0_4 = arith.constant 0 : index
    %c0_5 = arith.constant 0 : index
    %3 = vector.load %arg5[%c0_3, %c0_4, %c0_5] : memref<3x1x128xf32, #tpu.memory_space<vmem>>, vector<1x1x128xf32>
    %4 = vector.shape_cast %3 : vector<1x1x128xf32> to vector<1x128xf32>
    %5 = vector.broadcast %4 : vector<1x128xf32> to vector<128x128xf32>
    %6 = arith.addf %2, %5 : vector<128x128xf32>
    %cst_6 = arith.constant 0.000000e+00 : f32
    %7 = vector.broadcast %cst_6 : f32 to vector<128x128xf32>
    %8 = arith.maximumf %6, %7 : vector<128x128xf32>
    %c0_7 = arith.constant 0 : index
    %c0_8 = arith.constant 0 : index
    %c0_9 = arith.constant 0 : index
    %9 = vector.load %arg3[%c0_7, %c0_8, %c0_9] : memref<2x128x128xf32, #tpu.memory_space<vmem>>, vector<1x128x128xf32>
    %10 = vector.shape_cast %9 : vector<1x128x128xf32> to vector<128x128xf32>
    %cst_10 = arith.constant dense<0.000000e+00> : vector<128x128xf32>
    %11 = tpu.matmul %8, %10, %cst_10 {dimension_numbers = #tpu.dot_dimension_numbers<[1], [0], [0], [1], [0, 0, 1, 1], [], []>} : vector<128x128xf32>, vector<128x128xf32>, vector<128x128xf32> -> vector<128x128xf32>
    %c1 = arith.constant 1 : index
    %c0_11 = arith.constant 0 : index
    %c0_12 = arith.constant 0 : index
    %12 = vector.load %arg5[%c1, %c0_11, %c0_12] : memref<3x1x128xf32, #tpu.memory_space<vmem>>, vector<1x1x128xf32>
    %13 = vector.shape_cast %12 : vector<1x1x128xf32> to vector<1x128xf32>
    %14 = vector.broadcast %13 : vector<1x128xf32> to vector<128x128xf32>
    %15 = arith.addf %11, %14 : vector<128x128xf32>
    %cst_13 = arith.constant 0.000000e+00 : f32
    %16 = vector.broadcast %cst_13 : f32 to vector<128x128xf32>
    %17 = arith.maximumf %15, %16 : vector<128x128xf32>
    %c1_14 = arith.constant 1 : index
    %c0_15 = arith.constant 0 : index
    %c0_16 = arith.constant 0 : index
    %18 = vector.load %arg3[%c1_14, %c0_15, %c0_16] : memref<2x128x128xf32, #tpu.memory_space<vmem>>, vector<1x128x128xf32>
    %19 = vector.shape_cast %18 : vector<1x128x128xf32> to vector<128x128xf32>
    %cst_17 = arith.constant dense<0.000000e+00> : vector<128x128xf32>
    %20 = tpu.matmul %17, %19, %cst_17 {dimension_numbers = #tpu.dot_dimension_numbers<[1], [0], [0], [1], [0, 0, 1, 1], [], []>} : vector<128x128xf32>, vector<128x128xf32>, vector<128x128xf32> -> vector<128x128xf32>
    %c2 = arith.constant 2 : index
    %c0_18 = arith.constant 0 : index
    %c0_19 = arith.constant 0 : index
    %21 = vector.load %arg5[%c2, %c0_18, %c0_19] : memref<3x1x128xf32, #tpu.memory_space<vmem>>, vector<1x1x128xf32>
    %22 = vector.shape_cast %21 : vector<1x1x128xf32> to vector<1x128xf32>
    %23 = vector.broadcast %22 : vector<1x128xf32> to vector<128x128xf32>
    %24 = arith.addf %20, %23 : vector<128x128xf32>
    %cst_20 = arith.constant 0.000000e+00 : f32
    %25 = vector.broadcast %cst_20 : f32 to vector<128x128xf32>
    %26 = arith.maximumf %24, %25 : vector<128x128xf32>
    %c0_21 = arith.constant 0 : index
    %c0_22 = arith.constant 0 : index
    %27 = vector.load %arg4[%c0_21, %c0_22] : memref<128x8xf32, #tpu.memory_space<vmem>>, vector<128x8xf32>
    %cst_23 = arith.constant dense<0.000000e+00> : vector<128x8xf32>
    %28 = tpu.matmul %26, %27, %cst_23 {dimension_numbers = #tpu.dot_dimension_numbers<[1], [0], [0], [1], [0, 0, 1, 1], [], []>} : vector<128x128xf32>, vector<128x8xf32>, vector<128x8xf32> -> vector<128x8xf32>
    %c0_24 = arith.constant 0 : index
    %c0_25 = arith.constant 0 : index
    %29 = vector.load %arg6[%c0_24, %c0_25] : memref<1x8xf32, #tpu.memory_space<vmem>>, vector<1x8xf32>
    %30 = vector.broadcast %29 : vector<1x8xf32> to vector<128x8xf32>
    %31 = arith.addf %28, %30 : vector<128x8xf32>
    %32 = arith.negf %31 : vector<128x8xf32>
    %33 = math.exp %32 : vector<128x8xf32>
    %cst_26 = arith.constant 1.000000e+00 : f32
    %34 = vector.broadcast %cst_26 : f32 to vector<128x8xf32>
    %35 = arith.addf %34, %33 : vector<128x8xf32>
    %36 = arith.divf %34, %35 : vector<128x8xf32>
    %c0_27 = arith.constant 0 : index
    %c0_28 = arith.constant 0 : index
    %37 = vector.load %arg7[%c0_27, %c0_28] : memref<128x8xf32, #tpu.memory_space<vmem>>, vector<128x8xf32>
    tpu.vector_store %arg7[%c0_27, %c0_28], %36 {strides = array<i32>} : memref<128x8xf32, #tpu.memory_space<vmem>>, vector<128x8xf32>,
    return
  }
  func.func @transform_0(%arg0: i32) -> (i32, i32) {
    %c0_i32 = arith.constant 0 : i32
    %c0_i32_0 = arith.constant 0 : i32
    return %arg0, %c0_i32 : i32, i32
  }
  func.func @transform_1(%arg0: i32) -> (i32, i32) {
    %c0_i32 = arith.constant 0 : i32
    %c0_i32_0 = arith.constant 0 : i32
    %c0_i32_1 = arith.constant 0 : i32
    return %c0_i32, %c0_i32_0 : i32, i32
  }
  func.func @transform_2(%arg0: i32) -> (i32, i32, i32) {
    %c0_i32 = arith.constant 0 : i32
    %c0_i32_0 = arith.constant 0 : i32
    %c0_i32_1 = arith.constant 0 : i32
    %c0_i32_2 = arith.constant 0 : i32
    return %c0_i32, %c0_i32_0, %c0_i32_1 : i32, i32, i32
  }
  func.func @transform_3(%arg0: i32) -> (i32, i32) {
    %c0_i32 = arith.constant 0 : i32
    %c0_i32_0 = arith.constant 0 : i32
    %c0_i32_1 = arith.constant 0 : i32
    return %c0_i32, %c0_i32_0 : i32, i32
  }
  func.func @transform_4(%arg0: i32) -> (i32, i32, i32) {
    %c0_i32 = arith.constant 0 : i32
    %c0_i32_0 = arith.constant 0 : i32
    %c0_i32_1 = arith.constant 0 : i32
    %c0_i32_2 = arith.constant 0 : i32
    return %c0_i32, %c0_i32_0, %c0_i32_1 : i32, i32, i32
  }
  func.func @transform_5(%arg0: i32) -> (i32, i32) {
    %c0_i32 = arith.constant 0 : i32
    %c0_i32_0 = arith.constant 0 : i32
    %c0_i32_1 = arith.constant 0 : i32
    return %c0_i32, %c0_i32_0 : i32, i32
  }
  func.func @transform_6(%arg0: i32) -> (i32, i32) {
    %c0_i32 = arith.constant 0 : i32
    %c0_i32_0 = arith.constant 0 : i32
    return %arg0, %c0_i32 : i32, i32
  }
}

</mosaic_0001>

<llo_original>
// kernel: tpu_custom_call.1
$region0: #{tpu_custom_call.1}
  #allocation0 [shape = 'u32[]', space=smem, size = 0x4, offset = 0x4, fixed_abs, tag = 'smem constant byte address 0x4 - core index']
  #allocation1 [shape = 'u32[144,128]{1,0:T(1,128)}', space=vmem, size = 0x12000, scoped, tag = 'internal scratch']
  %s0 = inlined_call_operand.vmem [shape: f32[128,100], index: 0, kind: input, shape index: {}]
  %s1 = inlined_call_operand.vmem [shape: f32[100,128], index: 1, kind: input, shape index: {}]
  %s2 = inlined_call_operand.vmem [shape: f32[2,128,128], index: 2, kind: input, shape index: {}]
  %s3 = inlined_call_operand.vmem [shape: f32[128,8], index: 3, kind: input, shape index: {}]
  %s4 = inlined_call_operand.vmem [shape: f32[3,1,128], index: 4, kind: input, shape index: {}]
  %s5 = inlined_call_operand.vmem [shape: f32[1,8], index: 5, kind: input, shape index: {}]
  %s6 = inlined_call_operand.vmem [shape: f32[128,8], index: 6, kind: output, shape index: {}]
  %s7 = sld [smem:[#allocation0]]
  $region34: #{tpu_custom_call.1} parent=0
    _
  %s9 = ssub.s32 1, %s7
  %s10 = scalar_select 0, %s9, %s7
  // Predicated region
  $region2: #{tpu_custom_call.1} parent=0 // pred_check
    _
  $region3: #{tpu_custom_call.1} parent=0 // pred_check_branch
    %12 = sbr.rel (0) target = $region5
  $region4: #{tpu_custom_call.1} parent=0 // pred_region
    _
  $region5: #{tpu_custom_call.1} parent=0 // pred_fallthru
    _
  // Predicated region
  $region6: #{tpu_custom_call.1} parent=0 // pred_check
    _
  $region7: #{tpu_custom_call.1} parent=0 // pred_check_branch
    %14 = sbr.rel (0) target = $region9
  $region8: #{tpu_custom_call.1} parent=0 // pred_region
    _
  $region9: #{tpu_custom_call.1} parent=0 // pred_fallthru
    _
  // Predicated region
  $region10: #{tpu_custom_call.1} parent=0 // pred_check
    _
  $region11: #{tpu_custom_call.1} parent=0 // pred_check_branch
    %16 = sbr.rel (0) target = $region13
  $region12: #{tpu_custom_call.1} parent=0 // pred_region
    _
  $region13: #{tpu_custom_call.1} parent=0 // pred_fallthru
    _
  // Predicated region
  $region14: #{tpu_custom_call.1} parent=0 // pred_check
    _
  $region15: #{tpu_custom_call.1} parent=0 // pred_check_branch
    %18 = sbr.rel (0) target = $region17
  $region16: #{tpu_custom_call.1} parent=0 // pred_region
    _
  $region17: #{tpu_custom_call.1} parent=0 // pred_fallthru
    _
  // Predicated region
  $region18: #{tpu_custom_call.1} parent=0 // pred_check
    _
  $region19: #{tpu_custom_call.1} parent=0 // pred_check_branch
    %20 = sbr.rel (0) target = $region21
  $region20: #{tpu_custom_call.1} parent=0 // pred_region
    _
  $region21: #{tpu_custom_call.1} parent=0 // pred_fallthru
    _
  // Predicated region
  $region22: #{tpu_custom_call.1} parent=0 // pred_check
    _
  $region23: #{tpu_custom_call.1} parent=0 // pred_check_branch
    %22 = sbr.rel (0) target = $region25
  $region24: #{tpu_custom_call.1} parent=0 // pred_region
    _
  $region25: #{tpu_custom_call.1} parent=0 // pred_fallthru
    _
  %v23 = vld [vmem:[%s0] sm:$0xff]
  %v24 = vld [vmem:[%s0 + $0x8] sm:$0xff]
  %v25 = vld [vmem:[%s0 + $0x10] sm:$0xff]
  %v26 = vld [vmem:[%s0 + $0x18] sm:$0xff]
  %v27 = vld [vmem:[%s0 + $0x20] sm:$0xff]
  %v28 = vld [vmem:[%s0 + $0x28] sm:$0xff]
  %v29 = vld [vmem:[%s0 + $0x30] sm:$0xff]
  %v30 = vld [vmem:[%s0 + $0x38] sm:$0xff]
  %v31 = vld [vmem:[%s0 + $0x40] sm:$0xff]
  %v32 = vld [vmem:[%s0 + $0x48] sm:$0xff]
  %v33 = vld [vmem:[%s0 + $0x50] sm:$0xff]
  %v34 = vld [vmem:[%s0 + $0x58] sm:$0xff]
  %v35 = vld [vmem:[%s0 + $0x60] sm:$0xff]
  %v36 = vld [vmem:[%s0 + $0x68] sm:$0xff]
  %v37 = vld [vmem:[%s0 + $0x70] sm:$0xff]
  %v38 = vld [vmem:[%s0 + $0x78] sm:$0xff]
  %v39 = vld [vmem:[%s1] sm:$0xff]
  %v40 = vld [vmem:[%s1 + $0x8] sm:$0xff]
  %v41 = vld [vmem:[%s1 + $0x10] sm:$0xff]
  %v42 = vld [vmem:[%s1 + $0x18] sm:$0xff]
  %v43 = vld [vmem:[%s1 + $0x20] sm:$0xff]
  %v44 = vld [vmem:[%s1 + $0x28] sm:$0xff]
  %v45 = vld [vmem:[%s1 + $0x30] sm:$0xff]
  %v46 = vld [vmem:[%s1 + $0x38] sm:$0xff]
  %v47 = vld [vmem:[%s1 + $0x40] sm:$0xff]
  %v48 = vld [vmem:[%s1 + $0x48] sm:$0xff]
  %v49 = vld [vmem:[%s1 + $0x50] sm:$0xff]
  %v50 = vld [vmem:[%s1 + $0x58] sm:$0xff]
  %v51 = vld [vmem:[%s1 + $0x60] sm:$0xf]
  %v52 = vld [vmem:[%s4] sm:$0x1]
  %v54 = vlaneseq
  %v55 = vshrl.u32 %v54, 7
  %v56 = vsub.s32 0, %v55
  %v57 = vrot.slane %v52, %v56
  %vm59 = vcmask 818176
  %v61 = vsel %vm59, %v23, 0
  %v64 = vsel %vm59, %v24, 0
  %v67 = vsel %vm59, %v25, 0
  %v70 = vsel %vm59, %v26, 0
  %v73 = vsel %vm59, %v27, 0
  %v76 = vsel %vm59, %v28, 0
  %v79 = vsel %vm59, %v29, 0
  %v82 = vsel %vm59, %v30, 0
  %v85 = vsel %vm59, %v31, 0
  %v88 = vsel %vm59, %v32, 0
  %v91 = vsel %vm59, %v33, 0
  %v94 = vsel %vm59, %v34, 0
  %v97 = vsel %vm59, %v35, 0
  %v100 = vsel %vm59, %v36, 0
  %v103 = vsel %vm59, %v37, 0
  %v106 = vsel %vm59, %v38, 0
  %vm108 = vcmask 1043456
  %v110 = vsel %vm108, %v51, 0
  %112 = vmatprep.subr.mxu0 0.0
  %113 = vmatpush1.msra.mxu0 %v39
  %114 = vmatprep.subr.mxu0 0.0
  %115 = vmatpush1.msra.mxu0 %v40
  %116 = vmatprep.subr.mxu0 0.0
  %117 = vmatpush1.msra.mxu0 %v41
  %118 = vmatprep.subr.mxu0 0.0
  %119 = vmatpush1.msra.mxu0 %v42
  %120 = vmatprep.subr.mxu0 0.0
  %121 = vmatpush1.msra.mxu0 %v43
  %122 = vmatprep.subr.mxu0 0.0
  %123 = vmatpush1.msra.mxu0 %v44
  %124 = vmatprep.subr.mxu0 0.0
  %125 = vmatpush1.msra.mxu0 %v45
  %126 = vmatprep.subr.mxu0 0.0
  %127 = vmatpush1.msra.mxu0 %v46
  %128 = vmatprep.subr.mxu0 0.0
  %129 = vmatpush1.msra.mxu0 %v47
  %130 = vmatprep.subr.mxu0 0.0
  %131 = vmatpush1.msra.mxu0 %v48
  %132 = vmatprep.subr.mxu0 0.0
  %133 = vmatpush1.msra.mxu0 %v49
  %134 = vmatprep.subr.mxu0 0.0
  %135 = vmatpush1.msra.mxu0 %v50
  %136 = vmatprep.subr.mxu0 0.0
  %137 = vmatpush1.msra.mxu0 %v110
  %138 = vmatprep.subr.mxu0 0.0
  %139 = vmatpush1.msra.mxu0 0.0
  %140 = vmatprep.subr.mxu0 0.0
  %141 = vmatpush1.msra.mxu0 0.0
  %142 = vmatprep.subr.mxu0 0.0
  %143 = vmatpush1.msra.mxu0 0.0
  %144 = vmatprep.subr.mxu0 0.0
  %145 = vmatpush1.msra.mxu0 0.0
  %146 = vmatprep.subr.mxu0 0.0
  %147 = vmatpush1.msra.mxu0 0.0
  %148 = vmatprep.subr.mxu0 0.0
  %149 = vmatpush1.msra.mxu0 0.0
  %150 = vmatprep.subr.mxu0 0.0
  %151 = vmatpush1.msra.mxu0 0.0
  %152 = vmatprep.subr.mxu0 0.0
  %153 = vmatpush1.msra.mxu0 0.0
  %154 = vmatprep.subr.mxu0 0.0
  %155 = vmatpush1.msra.mxu0 0.0
  %156 = vmatprep.subr.mxu0 0.0
  %157 = vmatpush1.msra.mxu0 0.0
  %158 = vmatprep.subr.mxu0 0.0
  %159 = vmatpush1.msra.mxu0 0.0
  %160 = vmatprep.subr.mxu0 0.0
  %161 = vmatpush1.msra.mxu0 0.0
  %162 = vmatprep.subr.mxu0 0.0
  %163 = vmatpush1.msra.mxu0 0.0
  %164 = vmatprep.subr.mxu0 0.0
  %165 = vmatpush1.msra.mxu0 0.0
  %166 = vmatprep.subr.mxu0 0.0
  %167 = vmatpush1.msra.mxu0 0.0
  %168 = vmatprep.subr.mxu0 0.0
  %169 = vmatpush1.msra.mxu0 0.0
  %170 = vmatprep.subr.mxu0 0.0
  %171 = vmatpush1.msra.mxu0 0.0
  %172 = vmatprep.subr.mxu0 0.0
  %173 = vmatpush1.msra.mxu0 0.0
  %174 = vmatprep.subr.mxu0 0.0
  %175 = vmatpush1.msra.mxu0 0.0
  %176 = vmatprep.mubr.f32.mxu0 0.0
  %177 = vmatmul.mubr.f32.gmra.mrb[0].mxu0 %v61
  %v178 = vpop.f32.mrb[0].mxu0
  %v179 = vadd.f32 %v57, %v178
  %v180 = vpop.f32.mrb[0].mxu0
  %181 = vmatprep.mubr.f32.mxu0 0.0
  %182 = vmatmul.mubr.f32.gmra.mrb[0].mxu0 %v64
  %v183 = vpop.f32.mrb[0].mxu0
  %v184 = vadd.f32 %v57, %v183
  %v185 = vpop.f32.mrb[0].mxu0
  %186 = vmatprep.mubr.f32.mxu0 0.0
  %187 = vmatmul.mubr.f32.gmra.mrb[0].mxu0 %v67
  %v188 = vpop.f32.mrb[0].mxu0
  %v189 = vadd.f32 %v57, %v188
  %v190 = vpop.f32.mrb[0].mxu0
  %191 = vmatprep.mubr.f32.mxu0 0.0
  %192 = vmatmul.mubr.f32.gmra.mrb[0].mxu0 %v70
  %v193 = vpop.f32.mrb[0].mxu0
  %v194 = vadd.f32 %v57, %v193
  %v195 = vpop.f32.mrb[0].mxu0
  %196 = vmatprep.mubr.f32.mxu0 0.0
  %197 = vmatmul.mubr.f32.gmra.mrb[0].mxu0 %v73
  %v198 = vpop.f32.mrb[0].mxu0
  %v199 = vadd.f32 %v57, %v198
  %v200 = vpop.f32.mrb[0].mxu0
  %201 = vmatprep.mubr.f32.mxu0 0.0
  %202 = vmatmul.mubr.f32.gmra.mrb[0].mxu0 %v76
  %v203 = vpop.f32.mrb[0].mxu0
  %v204 = vadd.f32 %v57, %v203
  %v205 = vpop.f32.mrb[0].mxu0
  %206 = vmatprep.mubr.f32.mxu0 0.0
  %207 = vmatmul.mubr.f32.gmra.mrb[0].mxu0 %v79
  %v208 = vpop.f32.mrb[0].mxu0
  %v209 = vadd.f32 %v57, %v208
  %v210 = vpop.f32.mrb[0].mxu0
  %211 = vmatprep.mubr.f32.mxu0 0.0
  %212 = vmatmul.mubr.f32.gmra.mrb[0].mxu0 %v82
  %v213 = vpop.f32.mrb[0].mxu0
  %v214 = vadd.f32 %v57, %v213
  %v215 = vpop.f32.mrb[0].mxu0
  %216 = vmatprep.mubr.f32.mxu0 0.0
  %217 = vmatmul.mubr.f32.gmra.mrb[0].mxu0 %v85
  %v218 = vpop.f32.mrb[0].mxu0
  %v219 = vadd.f32 %v57, %v218
  %v220 = vpop.f32.mrb[0].mxu0
  %221 = vmatprep.mubr.f32.mxu0 0.0
  %222 = vmatmul.mubr.f32.gmra.mrb[0].mxu0 %v88
  %v223 = vpop.f32.mrb[0].mxu0
  %v224 = vadd.f32 %v57, %v223
  %v225 = vpop.f32.mrb[0].mxu0
  %226 = vmatprep.mubr.f32.mxu0 0.0
  %227 = vmatmul.mubr.f32.gmra.mrb[0].mxu0 %v91
  %v228 = vpop.f32.mrb[0].mxu0
  %v229 = vadd.f32 %v57, %v228
  %v230 = vpop.f32.mrb[0].mxu0
  %231 = vmatprep.mubr.f32.mxu0 0.0
  %232 = vmatmul.mubr.f32.gmra.mrb[0].mxu0 %v94
  %v233 = vpop.f32.mrb[0].mxu0
  %v234 = vadd.f32 %v57, %v233
  %v235 = vpop.f32.mrb[0].mxu0
  %236 = vmatprep.mubr.f32.mxu0 0.0
  %237 = vmatmul.mubr.f32.gmra.mrb[0].mxu0 %v97
  %v238 = vpop.f32.mrb[0].mxu0
  %v239 = vadd.f32 %v57, %v238
  %v240 = vpop.f32.mrb[0].mxu0
  %241 = vmatprep.mubr.f32.mxu0 0.0
  %242 = vmatmul.mubr.f32.gmra.mrb[0].mxu0 %v100
  %v243 = vpop.f32.mrb[0].mxu0
  %v244 = vadd.f32 %v57, %v243
  %v245 = vpop.f32.mrb[0].mxu0
  %246 = vmatprep.mubr.f32.mxu0 0.0
  %247 = vmatmul.mubr.f32.gmra.mrb[0].mxu0 %v103
  %v248 = vpop.f32.mrb[0].mxu0
  %v249 = vadd.f32 %v57, %v248
  %v250 = vpop.f32.mrb[0].mxu0
  %251 = vmatprep.mubr.f32.mxu0 0.0
  %252 = vmatmul.mubr.f32.gmra.mrb[0].mxu0 %v106
  %v253 = vpop.f32.mrb[0].mxu0
  %v254 = vadd.f32 %v57, %v253
  %v255 = vpop.f32.mrb[0].mxu0
  %256 = vdwg.mxu0
  %v257 = vmax.f32 %v179, 0.0
  %v258 = vmax.f32 %v184, 0.0
  %v259 = vmax.f32 %v189, 0.0
  %v260 = vmax.f32 %v194, 0.0
  %v261 = vmax.f32 %v199, 0.0
  %v262 = vmax.f32 %v204, 0.0
  %v263 = vmax.f32 %v209, 0.0
  %v264 = vmax.f32 %v214, 0.0
  %v265 = vmax.f32 %v219, 0.0
  %v266 = vmax.f32 %v224, 0.0
  %v267 = vmax.f32 %v229, 0.0
  %v268 = vmax.f32 %v234, 0.0
  %v269 = vmax.f32 %v239, 0.0
  %v270 = vmax.f32 %v244, 0.0
  %v271 = vmax.f32 %v249, 0.0
  %v272 = vmax.f32 %v254, 0.0
  %v273 = vld [vmem:[%s2] sm:$0xff]
  %v274 = vld [vmem:[%s2 + $0x8] sm:$0xff]
  %v275 = vld [vmem:[%s2 + $0x10] sm:$0xff]
  %v276 = vld [vmem:[%s2 + $0x18] sm:$0xff]
  %v277 = vld [vmem:[%s2 + $0x20] sm:$0xff]
  %v278 = vld [vmem:[%s2 + $0x28] sm:$0xff]
  %v279 = vld [vmem:[%s2 + $0x30] sm:$0xff]
  %v280 = vld [vmem:[%s2 + $0x38] sm:$0xff]
  %v281 = vld [vmem:[%s2 + $0x40] sm:$0xff]
  %v282 = vld [vmem:[%s2 + $0x48] sm:$0xff]
  %v283 = vld [vmem:[%s2 + $0x50] sm:$0xff]
  %v284 = vld [vmem:[%s2 + $0x58] sm:$0xff]
  %v285 = vld [vmem:[%s2 + $0x60] sm:$0xff]
  %v286 = vld [vmem:[%s2 + $0x68] sm:$0xff]
  %v287 = vld [vmem:[%s2 + $0x70] sm:$0xff]
  %v288 = vld [vmem:[%s2 + $0x78] sm:$0xff]
  %s289 = scalar_lea.vmem %s4, 1
  %v290 = vld [vmem:[%s289] sm:$0x1]
  %v292 = vlaneseq
  %v293 = vshrl.u32 %v292, 7
  %v294 = vsub.s32 0, %v293
  %v295 = vrot.slane %v290, %v294
  %297 = vmatprep.subr.mxu0 0.0
  %298 = vmatpush1.msra.mxu0 %v273
  %299 = vmatprep.subr.mxu0 0.0
  %300 = vmatpush1.msra.mxu0 %v274
  %301 = vmatprep.subr.mxu0 0.0
  %302 = vmatpush1.msra.mxu0 %v275
  %303 = vmatprep.subr.mxu0 0.0
  %304 = vmatpush1.msra.mxu0 %v276
  %305 = vmatprep.subr.mxu0 0.0
  %306 = vmatpush1.msra.mxu0 %v277
  %307 = vmatprep.subr.mxu0 0.0
  %308 = vmatpush1.msra.mxu0 %v278
  %309 = vmatprep.subr.mxu0 0.0
  %310 = vmatpush1.msra.mxu0 %v279
  %311 = vmatprep.subr.mxu0 0.0
  %312 = vmatpush1.msra.mxu0 %v280
  %313 = vmatprep.subr.mxu0 0.0
  %314 = vmatpush1.msra.mxu0 %v281
  %315 = vmatprep.subr.mxu0 0.0
  %316 = vmatpush1.msra.mxu0 %v282
  %317 = vmatprep.subr.mxu0 0.0
  %318 = vmatpush1.msra.mxu0 %v283
  %319 = vmatprep.subr.mxu0 0.0
  %320 = vmatpush1.msra.mxu0 %v284
  %321 = vmatprep.subr.mxu0 0.0
  %322 = vmatpush1.msra.mxu0 %v285
  %323 = vmatprep.subr.mxu0 0.0
  %324 = vmatpush1.msra.mxu0 %v286
  %325 = vmatprep.subr.mxu0 0.0
  %326 = vmatpush1.msra.mxu0 %v287
  %327 = vmatprep.subr.mxu0 0.0
  %328 = vmatpush1.msra.mxu0 %v288
  %329 = vmatprep.subr.mxu0 0.0
  %330 = vmatpush1.msra.mxu0 0.0
  %331 = vmatprep.subr.mxu0 0.0
  %332 = vmatpush1.msra.mxu0 0.0
  %333 = vmatprep.subr.mxu0 0.0
  %334 = vmatpush1.msra.mxu0 0.0
  %335 = vmatprep.subr.mxu0 0.0
  %336 = vmatpush1.msra.mxu0 0.0
  %337 = vmatprep.subr.mxu0 0.0
  %338 = vmatpush1.msra.mxu0 0.0
  %339 = vmatprep.subr.mxu0 0.0
  %340 = vmatpush1.msra.mxu0 0.0
  %341 = vmatprep.subr.mxu0 0.0
  %342 = vmatpush1.msra.mxu0 0.0
  %343 = vmatprep.subr.mxu0 0.0
  %344 = vmatpush1.msra.mxu0 0.0
  %345 = vmatprep.subr.mxu0 0.0
  %346 = vmatpush1.msra.mxu0 0.0
  %347 = vmatprep.subr.mxu0 0.0
  %348 = vmatpush1.msra.mxu0 0.0
  %349 = vmatprep.subr.mxu0 0.0
  %350 = vmatpush1.msra.mxu0 0.0
  %351 = vmatprep.subr.mxu0 0.0
  %352 = vmatpush1.msra.mxu0 0.0
  %353 = vmatprep.subr.mxu0 0.0
  %354 = vmatpush1.msra.mxu0 0.0
  %355 = vmatprep.subr.mxu0 0.0
  %356 = vmatpush1.msra.mxu0 0.0
  %357 = vmatprep.subr.mxu0 0.0
  %358 = vmatpush1.msra.mxu0 0.0
  %359 = vmatprep.subr.mxu0 0.0
  %360 = vmatpush1.msra.mxu0 0.0
  %361 = vmatprep.mubr.f32.mxu0 0.0
  %362 = vmatmul.mubr.f32.gmra.mrb[0].mxu0 %v257
  %v363 = vpop.f32.mrb[0].mxu0
  %v364 = vadd.f32 %v295, %v363
  %v365 = vpop.f32.mrb[0].mxu0
  %366 = vmatprep.mubr.f32.mxu0 0.0
  %367 = vmatmul.mubr.f32.gmra.mrb[0].mxu0 %v258
  %v368 = vpop.f32.mrb[0].mxu0
  %v369 = vadd.f32 %v295, %v368
  %v370 = vpop.f32.mrb[0].mxu0
  %371 = vmatprep.mubr.f32.mxu0 0.0
  %372 = vmatmul.mubr.f32.gmra.mrb[0].mxu0 %v259
  %v373 = vpop.f32.mrb[0].mxu0
  %v374 = vadd.f32 %v295, %v373
  %v375 = vpop.f32.mrb[0].mxu0
  %376 = vmatprep.mubr.f32.mxu0 0.0
  %377 = vmatmul.mubr.f32.gmra.mrb[0].mxu0 %v260
  %v378 = vpop.f32.mrb[0].mxu0
  %v379 = vadd.f32 %v295, %v378
  %v380 = vpop.f32.mrb[0].mxu0
  %381 = vmatprep.mubr.f32.mxu0 0.0
  %382 = vmatmul.mubr.f32.gmra.mrb[0].mxu0 %v261
  %v383 = vpop.f32.mrb[0].mxu0
  %v384 = vadd.f32 %v295, %v383
  %v385 = vpop.f32.mrb[0].mxu0
  %386 = vmatprep.mubr.f32.mxu0 0.0
  %387 = vmatmul.mubr.f32.gmra.mrb[0].mxu0 %v262
  %v388 = vpop.f32.mrb[0].mxu0
  %v389 = vadd.f32 %v295, %v388
  %v390 = vpop.f32.mrb[0].mxu0
  %391 = vmatprep.mubr.f32.mxu0 0.0
  %392 = vmatmul.mubr.f32.gmra.mrb[0].mxu0 %v263
  %v393 = vpop.f32.mrb[0].mxu0
  %v394 = vadd.f32 %v295, %v393
  %v395 = vpop.f32.mrb[0].mxu0
  %396 = vmatprep.mubr.f32.mxu0 0.0
  %397 = vmatmul.mubr.f32.gmra.mrb[0].mxu0 %v264
  %v398 = vpop.f32.mrb[0].mxu0
  %v399 = vadd.f32 %v295, %v398
  %v400 = vpop.f32.mrb[0].mxu0
  %401 = vmatprep.mubr.f32.mxu0 0.0
  %402 = vmatmul.mubr.f32.gmra.mrb[0].mxu0 %v265
  %v403 = vpop.f32.mrb[0].mxu0
  %v404 = vadd.f32 %v295, %v403
  %v405 = vpop.f32.mrb[0].mxu0
  %406 = vmatprep.mubr.f32.mxu0 0.0
  %407 = vmatmul.mubr.f32.gmra.mrb[0].mxu0 %v266
  %v408 = vpop.f32.mrb[0].mxu0
  %v409 = vadd.f32 %v295, %v408
  %v410 = vpop.f32.mrb[0].mxu0
  %411 = vmatprep.mubr.f32.mxu0 0.0
  %412 = vmatmul.mubr.f32.gmra.mrb[0].mxu0 %v267
  %v413 = vpop.f32.mrb[0].mxu0
  %v414 = vadd.f32 %v295, %v413
  %v415 = vpop.f32.mrb[0].mxu0
  %416 = vmatprep.mubr.f32.mxu0 0.0
  %417 = vmatmul.mubr.f32.gmra.mrb[0].mxu0 %v268
  %v418 = vpop.f32.mrb[0].mxu0
  %v419 = vadd.f32 %v295, %v418
  %v420 = vpop.f32.mrb[0].mxu0
  %421 = vmatprep.mubr.f32.mxu0 0.0
  %422 = vmatmul.mubr.f32.gmra.mrb[0].mxu0 %v269
  %v423 = vpop.f32.mrb[0].mxu0
  %v424 = vadd.f32 %v295, %v423
  %v425 = vpop.f32.mrb[0].mxu0
  %426 = vmatprep.mubr.f32.mxu0 0.0
  %427 = vmatmul.mubr.f32.gmra.mrb[0].mxu0 %v270
  %v428 = vpop.f32.mrb[0].mxu0
  %v429 = vadd.f32 %v295, %v428
  %v430 = vpop.f32.mrb[0].mxu0
  %431 = vmatprep.mubr.f32.mxu0 0.0
  %432 = vmatmul.mubr.f32.gmra.mrb[0].mxu0 %v271
  %v433 = vpop.f32.mrb[0].mxu0
  %v434 = vadd.f32 %v295, %v433
  %v435 = vpop.f32.mrb[0].mxu0
  %436 = vmatprep.mubr.f32.mxu0 0.0
  %437 = vmatmul.mubr.f32.gmra.mrb[0].mxu0 %v272
  %v438 = vpop.f32.mrb[0].mxu0
  %v439 = vadd.f32 %v295, %v438
  %v440 = vpop.f32.mrb[0].mxu0
  %441 = vdwg.mxu0
  %v442 = vmax.f32 %v364, 0.0
  %v443 = vmax.f32 %v369, 0.0
  %v444 = vmax.f32 %v374, 0.0
  %v445 = vmax.f32 %v379, 0.0
  %v446 = vmax.f32 %v384, 0.0
  %v447 = vmax.f32 %v389, 0.0
  %v448 = vmax.f32 %v394, 0.0
  %v449 = vmax.f32 %v399, 0.0
  %v450 = vmax.f32 %v404, 0.0
  %v451 = vmax.f32 %v409, 0.0
  %v452 = vmax.f32 %v414, 0.0
  %v453 = vmax.f32 %v419, 0.0
  %v454 = vmax.f32 %v424, 0.0
  %v455 = vmax.f32 %v429, 0.0
  %v456 = vmax.f32 %v434, 0.0
  %v457 = vmax.f32 %v439, 0.0
  %s458 = scalar_lea.vmem %s2, 128
  %v459 = vld [vmem:[%s458] sm:$0xff]
  %v460 = vld [vmem:[%s458 + $0x8] sm:$0xff]
  %v461 = vld [vmem:[%s458 + $0x10] sm:$0xff]
  %v462 = vld [vmem:[%s458 + $0x18] sm:$0xff]
  %v463 = vld [vmem:[%s458 + $0x20] sm:$0xff]
  %v464 = vld [vmem:[%s458 + $0x28] sm:$0xff]
  %v465 = vld [vmem:[%s458 + $0x30] sm:$0xff]
  %v466 = vld [vmem:[%s458 + $0x38] sm:$0xff]
  %v467 = vld [vmem:[%s458 + $0x40] sm:$0xff]
  %v468 = vld [vmem:[%s458 + $0x48] sm:$0xff]
  %v469 = vld [vmem:[%s458 + $0x50] sm:$0xff]
  %v470 = vld [vmem:[%s458 + $0x58] sm:$0xff]
  %v471 = vld [vmem:[%s458 + $0x60] sm:$0xff]
  %v472 = vld [vmem:[%s458 + $0x68] sm:$0xff]
  %v473 = vld [vmem:[%s458 + $0x70] sm:$0xff]
  %v474 = vld [vmem:[%s458 + $0x78] sm:$0xff]
  %s475 = scalar_lea.vmem %s4, 2
  %v476 = vld [vmem:[%s475] sm:$0x1]
  %v478 = vlaneseq
  %v479 = vshrl.u32 %v478, 7
  %v480 = vsub.s32 0, %v479
  %v481 = vrot.slane %v476, %v480
  %483 = vmatprep.subr.mxu0 0.0
  %484 = vmatpush1.msra.mxu0 %v459
  %485 = vmatprep.subr.mxu0 0.0
  %486 = vmatpush1.msra.mxu0 %v460
  %487 = vmatprep.subr.mxu0 0.0
  %488 = vmatpush1.msra.mxu0 %v461
  %489 = vmatprep.subr.mxu0 0.0
  %490 = vmatpush1.msra.mxu0 %v462
  %491 = vmatprep.subr.mxu0 0.0
  %492 = vmatpush1.msra.mxu0 %v463
  %493 = vmatprep.subr.mxu0 0.0
  %494 = vmatpush1.msra.mxu0 %v464
  %495 = vmatprep.subr.mxu0 0.0
  %496 = vmatpush1.msra.mxu0 %v465
  %497 = vmatprep.subr.mxu0 0.0
  %498 = vmatpush1.msra.mxu0 %v466
  %499 = vmatprep.subr.mxu0 0.0
  %500 = vmatpush1.msra.mxu0 %v467
  %501 = vmatprep.subr.mxu0 0.0
  %502 = vmatpush1.msra.mxu0 %v468
  %503 = vmatprep.subr.mxu0 0.0
  %504 = vmatpush1.msra.mxu0 %v469
  %505 = vmatprep.subr.mxu0 0.0
  %506 = vmatpush1.msra.mxu0 %v470
  %507 = vmatprep.subr.mxu0 0.0
  %508 = vmatpush1.msra.mxu0 %v471
  %509 = vmatprep.subr.mxu0 0.0
  %510 = vmatpush1.msra.mxu0 %v472
  %511 = vmatprep.subr.mxu0 0.0
  %512 = vmatpush1.msra.mxu0 %v473
  %513 = vmatprep.subr.mxu0 0.0
  %514 = vmatpush1.msra.mxu0 %v474
  %515 = vmatprep.subr.mxu0 0.0
  %516 = vmatpush1.msra.mxu0 0.0
  %517 = vmatprep.subr.mxu0 0.0
  %518 = vmatpush1.msra.mxu0 0.0
  %519 = vmatprep.subr.mxu0 0.0
  %520 = vmatpush1.msra.mxu0 0.0
  %521 = vmatprep.subr.mxu0 0.0
  %522 = vmatpush1.msra.mxu0 0.0
  %523 = vmatprep.subr.mxu0 0.0
  %524 = vmatpush1.msra.mxu0 0.0
  %525 = vmatprep.subr.mxu0 0.0
  %526 = vmatpush1.msra.mxu0 0.0
  %527 = vmatprep.subr.mxu0 0.0
  %528 = vmatpush1.msra.mxu0 0.0
  %529 = vmatprep.subr.mxu0 0.0
  %530 = vmatpush1.msra.mxu0 0.0
  %531 = vmatprep.subr.mxu0 0.0
  %532 = vmatpush1.msra.mxu0 0.0
  %533 = vmatprep.subr.mxu0 0.0
  %534 = vmatpush1.msra.mxu0 0.0
  %535 = vmatprep.subr.mxu0 0.0
  %536 = vmatpush1.msra.mxu0 0.0
  %537 = vmatprep.subr.mxu0 0.0
  %538 = vmatpush1.msra.mxu0 0.0
  %539 = vmatprep.subr.mxu0 0.0
  %540 = vmatpush1.msra.mxu0 0.0
  %541 = vmatprep.subr.mxu0 0.0
  %542 = vmatpush1.msra.mxu0 0.0
  %543 = vmatprep.subr.mxu0 0.0
  %544 = vmatpush1.msra.mxu0 0.0
  %545 = vmatprep.subr.mxu0 0.0
  %546 = vmatpush1.msra.mxu0 0.0
  %547 = vmatprep.mubr.f32.mxu0 0.0
  %548 = vmatmul.mubr.f32.gmra.mrb[0].mxu0 %v442
  %v549 = vpop.f32.mrb[0].mxu0
  %v550 = vadd.f32 %v481, %v549
  %v551 = vpop.f32.mrb[0].mxu0
  %552 = vmatprep.mubr.f32.mxu0 0.0
  %553 = vmatmul.mubr.f32.gmra.mrb[0].mxu0 %v443
  %v554 = vpop.f32.mrb[0].mxu0
  %v555 = vadd.f32 %v481, %v554
  %v556 = vpop.f32.mrb[0].mxu0
  %557 = vmatprep.mubr.f32.mxu0 0.0
  %558 = vmatmul.mubr.f32.gmra.mrb[0].mxu0 %v444
  %v559 = vpop.f32.mrb[0].mxu0
  %v560 = vadd.f32 %v481, %v559
  %v561 = vpop.f32.mrb[0].mxu0
  %562 = vmatprep.mubr.f32.mxu0 0.0
  %563 = vmatmul.mubr.f32.gmra.mrb[0].mxu0 %v445
  %v564 = vpop.f32.mrb[0].mxu0
  %v565 = vadd.f32 %v481, %v564
  %v566 = vpop.f32.mrb[0].mxu0
  %567 = vmatprep.mubr.f32.mxu0 0.0
  %568 = vmatmul.mubr.f32.gmra.mrb[0].mxu0 %v446
  %v569 = vpop.f32.mrb[0].mxu0
  %v570 = vadd.f32 %v481, %v569
  %v571 = vpop.f32.mrb[0].mxu0
  %572 = vmatprep.mubr.f32.mxu0 0.0
  %573 = vmatmul.mubr.f32.gmra.mrb[0].mxu0 %v447
  %v574 = vpop.f32.mrb[0].mxu0
  %v575 = vadd.f32 %v481, %v574
  %v576 = vpop.f32.mrb[0].mxu0
  %577 = vmatprep.mubr.f32.mxu0 0.0
  %578 = vmatmul.mubr.f32.gmra.mrb[0].mxu0 %v448
  %v579 = vpop.f32.mrb[0].mxu0
  %v580 = vadd.f32 %v481, %v579
  %v581 = vpop.f32.mrb[0].mxu0
  %582 = vmatprep.mubr.f32.mxu0 0.0
  %583 = vmatmul.mubr.f32.gmra.mrb[0].mxu0 %v449
  %v584 = vpop.f32.mrb[0].mxu0
  %v585 = vadd.f32 %v481, %v584
  %v586 = vpop.f32.mrb[0].mxu0
  %587 = vmatprep.mubr.f32.mxu0 0.0
  %588 = vmatmul.mubr.f32.gmra.mrb[0].mxu0 %v450
  %v589 = vpop.f32.mrb[0].mxu0
  %v590 = vadd.f32 %v481, %v589
  %v591 = vpop.f32.mrb[0].mxu0
  %592 = vmatprep.mubr.f32.mxu0 0.0
  %593 = vmatmul.mubr.f32.gmra.mrb[0].mxu0 %v451
  %v594 = vpop.f32.mrb[0].mxu0
  %v595 = vadd.f32 %v481, %v594
  %v596 = vpop.f32.mrb[0].mxu0
  %597 = vmatprep.mubr.f32.mxu0 0.0
  %598 = vmatmul.mubr.f32.gmra.mrb[0].mxu0 %v452
  %v599 = vpop.f32.mrb[0].mxu0
  %v600 = vadd.f32 %v481, %v599
  %v601 = vpop.f32.mrb[0].mxu0
  %602 = vmatprep.mubr.f32.mxu0 0.0
  %603 = vmatmul.mubr.f32.gmra.mrb[0].mxu0 %v453
  %v604 = vpop.f32.mrb[0].mxu0
  %v605 = vadd.f32 %v481, %v604
  %v606 = vpop.f32.mrb[0].mxu0
  %607 = vmatprep.mubr.f32.mxu0 0.0
  %608 = vmatmul.mubr.f32.gmra.mrb[0].mxu0 %v454
  %v609 = vpop.f32.mrb[0].mxu0
  %v610 = vadd.f32 %v481, %v609
  %v611 = vpop.f32.mrb[0].mxu0
  %612 = vmatprep.mubr.f32.mxu0 0.0
  %613 = vmatmul.mubr.f32.gmra.mrb[0].mxu0 %v455
  %v614 = vpop.f32.mrb[0].mxu0
  %v615 = vadd.f32 %v481, %v614
  %v616 = vpop.f32.mrb[0].mxu0
  %617 = vmatprep.mubr.f32.mxu0 0.0
  %618 = vmatmul.mubr.f32.gmra.mrb[0].mxu0 %v456
  %v619 = vpop.f32.mrb[0].mxu0
  %v620 = vadd.f32 %v481, %v619
  %v621 = vpop.f32.mrb[0].mxu0
  %622 = vmatprep.mubr.f32.mxu0 0.0
  %623 = vmatmul.mubr.f32.gmra.mrb[0].mxu0 %v457
  %v624 = vpop.f32.mrb[0].mxu0
  %v625 = vadd.f32 %v481, %v624
  %v626 = vpop.f32.mrb[0].mxu0
  %627 = vdwg.mxu0
  %v628 = vmax.f32 %v550, 0.0
  %v629 = vmax.f32 %v555, 0.0
  %v630 = vmax.f32 %v560, 0.0
  %v631 = vmax.f32 %v565, 0.0
  %v632 = vmax.f32 %v570, 0.0
  %v633 = vmax.f32 %v575, 0.0
  %v634 = vmax.f32 %v580, 0.0
  %v635 = vmax.f32 %v585, 0.0
  %v636 = vmax.f32 %v590, 0.0
  %v637 = vmax.f32 %v595, 0.0
  %v638 = vmax.f32 %v600, 0.0
  %v639 = vmax.f32 %v605, 0.0
  %v640 = vmax.f32 %v610, 0.0
  %v641 = vmax.f32 %v615, 0.0
  %v642 = vmax.f32 %v620, 0.0
  %v643 = vmax.f32 %v625, 0.0
  %v644 = vld [vmem:[%s3] sm:$0xff]
  %v645 = vld [vmem:[%s3 + $0x8] sm:$0xff]
  %v646 = vld [vmem:[%s3 + $0x10] sm:$0xff]
  %v647 = vld [vmem:[%s3 + $0x18] sm:$0xff]
  %v648 = vld [vmem:[%s3 + $0x20] sm:$0xff]
  %v649 = vld [vmem:[%s3 + $0x28] sm:$0xff]
  %v650 = vld [vmem:[%s3 + $0x30] sm:$0xff]
  %v651 = vld [vmem:[%s3 + $0x38] sm:$0xff]
  %v652 = vld [vmem:[%s3 + $0x40] sm:$0xff]
  %v653 = vld [vmem:[%s3 + $0x48] sm:$0xff]
  %v654 = vld [vmem:[%s3 + $0x50] sm:$0xff]
  %v655 = vld [vmem:[%s3 + $0x58] sm:$0xff]
  %v656 = vld [vmem:[%s3 + $0x60] sm:$0xff]
  %v657 = vld [vmem:[%s3 + $0x68] sm:$0xff]
  %v658 = vld [vmem:[%s3 + $0x70] sm:$0xff]
  %v659 = vld [vmem:[%s3 + $0x78] sm:$0xff]
  %v660 = vld [vmem:[%s5] sm:$0x1]
  %v662 = vlaneseq
  %v663 = vshrl.u32 %v662, 7
  %v664 = vsub.s32 0, %v663
  %v665 = vrot.slane %v660, %v664
  %667 = vmatprep.subr.mxu0 0.0
  %668 = vmatpush1.msra.mxu0 %v644
  %669 = vmatprep.subr.mxu0 0.0
  %670 = vmatpush1.msra.mxu0 %v645
  %671 = vmatprep.subr.mxu0 0.0
  %672 = vmatpush1.msra.mxu0 %v646
  %673 = vmatprep.subr.mxu0 0.0
  %674 = vmatpush1.msra.mxu0 %v647
  %675 = vmatprep.subr.mxu0 0.0
  %676 = vmatpush1.msra.mxu0 %v648
  %677 = vmatprep.subr.mxu0 0.0
  %678 = vmatpush1.msra.mxu0 %v649
  %679 = vmatprep.subr.mxu0 0.0
  %680 = vmatpush1.msra.mxu0 %v650
  %681 = vmatprep.subr.mxu0 0.0
  %682 = vmatpush1.msra.mxu0 %v651
  %683 = vmatprep.subr.mxu0 0.0
  %684 = vmatpush1.msra.mxu0 %v652
  %685 = vmatprep.subr.mxu0 0.0
  %686 = vmatpush1.msra.mxu0 %v653
  %687 = vmatprep.subr.mxu0 0.0
  %688 = vmatpush1.msra.mxu0 %v654
  %689 = vmatprep.subr.mxu0 0.0
  %690 = vmatpush1.msra.mxu0 %v655
  %691 = vmatprep.subr.mxu0 0.0
  %692 = vmatpush1.msra.mxu0 %v656
  %693 = vmatprep.subr.mxu0 0.0
  %694 = vmatpush1.msra.mxu0 %v657
  %695 = vmatprep.subr.mxu0 0.0
  %696 = vmatpush1.msra.mxu0 %v658
  %697 = vmatprep.subr.mxu0 0.0
  %698 = vmatpush1.msra.mxu0 %v659
  %699 = vmatprep.subr.mxu0 0.0
  %700 = vmatpush1.msra.mxu0 0.0
  %701 = vmatprep.subr.mxu0 0.0
  %702 = vmatpush1.msra.mxu0 0.0
  %703 = vmatprep.subr.mxu0 0.0
  %704 = vmatpush1.msra.mxu0 0.0
  %705 = vmatprep.subr.mxu0 0.0
  %706 = vmatpush1.msra.mxu0 0.0
  %707 = vmatprep.subr.mxu0 0.0
  %708 = vmatpush1.msra.mxu0 0.0
  %709 = vmatprep.subr.mxu0 0.0
  %710 = vmatpush1.msra.mxu0 0.0
  %711 = vmatprep.subr.mxu0 0.0
  %712 = vmatpush1.msra.mxu0 0.0
  %713 = vmatprep.subr.mxu0 0.0
  %714 = vmatpush1.msra.mxu0 0.0
  %715 = vmatprep.subr.mxu0 0.0
  %716 = vmatpush1.msra.mxu0 0.0
  %717 = vmatprep.subr.mxu0 0.0
  %718 = vmatpush1.msra.mxu0 0.0
  %719 = vmatprep.subr.mxu0 0.0
  %720 = vmatpush1.msra.mxu0 0.0
  %721 = vmatprep.subr.mxu0 0.0
  %722 = vmatpush1.msra.mxu0 0.0
  %723 = vmatprep.subr.mxu0 0.0
  %724 = vmatpush1.msra.mxu0 0.0
  %725 = vmatprep.subr.mxu0 0.0
  %726 = vmatpush1.msra.mxu0 0.0
  %727 = vmatprep.subr.mxu0 0.0
  %728 = vmatpush1.msra.mxu0 0.0
  %729 = vmatprep.subr.mxu0 0.0
  %730 = vmatpush1.msra.mxu0 0.0
  %731 = vmatprep.mubr.f32.mxu0 0.0
  %732 = vmatmul.mubr.f32.gmra.mrb[0].mxu0 %v628
  %v733 = vpop.f32.mrb[0].mxu0
  %v734 = vadd.f32 %v665, %v733
  %v735 = vpop.f32.mrb[0].mxu0
  %736 = vmatprep.mubr.f32.mxu0 0.0
  %737 = vmatmul.mubr.f32.gmra.mrb[0].mxu0 %v629
  %v738 = vpop.f32.mrb[0].mxu0
  %v739 = vadd.f32 %v665, %v738
  %v740 = vpop.f32.mrb[0].mxu0
  %741 = vmatprep.mubr.f32.mxu0 0.0
  %742 = vmatmul.mubr.f32.gmra.mrb[0].mxu0 %v630
  %v743 = vpop.f32.mrb[0].mxu0
  %v744 = vadd.f32 %v665, %v743
  %v745 = vpop.f32.mrb[0].mxu0
  %746 = vmatprep.mubr.f32.mxu0 0.0
  %747 = vmatmul.mubr.f32.gmra.mrb[0].mxu0 %v631
  %v748 = vpop.f32.mrb[0].mxu0
  %v749 = vadd.f32 %v665, %v748
  %v750 = vpop.f32.mrb[0].mxu0
  %751 = vmatprep.mubr.f32.mxu0 0.0
  %752 = vmatmul.mubr.f32.gmra.mrb[0].mxu0 %v632
  %v753 = vpop.f32.mrb[0].mxu0
  %v754 = vadd.f32 %v665, %v753
  %v755 = vpop.f32.mrb[0].mxu0
  %756 = vmatprep.mubr.f32.mxu0 0.0
  %757 = vmatmul.mubr.f32.gmra.mrb[0].mxu0 %v633
  %v758 = vpop.f32.mrb[0].mxu0
  %v759 = vadd.f32 %v665, %v758
  %v760 = vpop.f32.mrb[0].mxu0
  %761 = vmatprep.mubr.f32.mxu0 0.0
  %762 = vmatmul.mubr.f32.gmra.mrb[0].mxu0 %v634
  %v763 = vpop.f32.mrb[0].mxu0
  %v764 = vadd.f32 %v665, %v763
  %v765 = vpop.f32.mrb[0].mxu0
  %766 = vmatprep.mubr.f32.mxu0 0.0
  %767 = vmatmul.mubr.f32.gmra.mrb[0].mxu0 %v635
  %v768 = vpop.f32.mrb[0].mxu0
  %v769 = vadd.f32 %v665, %v768
  %v770 = vpop.f32.mrb[0].mxu0
  %771 = vmatprep.mubr.f32.mxu0 0.0
  %772 = vmatmul.mubr.f32.gmra.mrb[0].mxu0 %v636
  %v773 = vpop.f32.mrb[0].mxu0
  %v774 = vadd.f32 %v665, %v773
  %v775 = vpop.f32.mrb[0].mxu0
  %776 = vmatprep.mubr.f32.mxu0 0.0
  %777 = vmatmul.mubr.f32.gmra.mrb[0].mxu0 %v637
  %v778 = vpop.f32.mrb[0].mxu0
  %v779 = vadd.f32 %v665, %v778
  %v780 = vpop.f32.mrb[0].mxu0
  %781 = vmatprep.mubr.f32.mxu0 0.0
  %782 = vmatmul.mubr.f32.gmra.mrb[0].mxu0 %v638
  %v783 = vpop.f32.mrb[0].mxu0
  %v784 = vadd.f32 %v665, %v783
  %v785 = vpop.f32.mrb[0].mxu0
  %786 = vmatprep.mubr.f32.mxu0 0.0
  %787 = vmatmul.mubr.f32.gmra.mrb[0].mxu0 %v639
  %v788 = vpop.f32.mrb[0].mxu0
  %v789 = vadd.f32 %v665, %v788
  %v790 = vpop.f32.mrb[0].mxu0
  %791 = vmatprep.mubr.f32.mxu0 0.0
  %792 = vmatmul.mubr.f32.gmra.mrb[0].mxu0 %v640
  %v793 = vpop.f32.mrb[0].mxu0
  %v794 = vadd.f32 %v665, %v793
  %v795 = vpop.f32.mrb[0].mxu0
  %796 = vmatprep.mubr.f32.mxu0 0.0
  %797 = vmatmul.mubr.f32.gmra.mrb[0].mxu0 %v641
  %v798 = vpop.f32.mrb[0].mxu0
  %v799 = vadd.f32 %v665, %v798
  %v800 = vpop.f32.mrb[0].mxu0
  %801 = vmatprep.mubr.f32.mxu0 0.0
  %802 = vmatmul.mubr.f32.gmra.mrb[0].mxu0 %v642
  %v803 = vpop.f32.mrb[0].mxu0
  %v804 = vadd.f32 %v665, %v803
  %v805 = vpop.f32.mrb[0].mxu0
  %806 = vmatprep.mubr.f32.mxu0 0.0
  %807 = vmatmul.mubr.f32.gmra.mrb[0].mxu0 %v643
  %v808 = vpop.f32.mrb[0].mxu0
  %v809 = vadd.f32 %v665, %v808
  %v810 = vpop.f32.mrb[0].mxu0
  %811 = vdwg.mxu0
  %v812 = vxor.u32 %v734, 2147483648
  %v813 = vxor.u32 %v739, 2147483648
  %v814 = vxor.u32 %v744, 2147483648
  %v815 = vxor.u32 %v749, 2147483648
  %v816 = vxor.u32 %v754, 2147483648
  %v817 = vxor.u32 %v759, 2147483648
  %v818 = vxor.u32 %v764, 2147483648
  %v819 = vxor.u32 %v769, 2147483648
  %v820 = vxor.u32 %v774, 2147483648
  %v821 = vxor.u32 %v779, 2147483648
  %v822 = vxor.u32 %v784, 2147483648
  %v823 = vxor.u32 %v789, 2147483648
  %v824 = vxor.u32 %v794, 2147483648
  %v825 = vxor.u32 %v799, 2147483648
  %v826 = vxor.u32 %v804, 2147483648
  %v827 = vxor.u32 %v809, 2147483648
  %v828 = vmul.f32 %v812, 1.442695
  %v829 = vpow.pop %v828
  %v830 = vmul.f32 %v813, 1.442695
  %v831 = vpow.pop %v830
  %v832 = vmul.f32 %v814, 1.442695
  %v833 = vpow.pop %v832
  %v834 = vmul.f32 %v815, 1.442695
  %v835 = vpow.pop %v834
  %v836 = vmul.f32 %v816, 1.442695
  %v837 = vpow.pop %v836
  %v838 = vmul.f32 %v817, 1.442695
  %v839 = vpow.pop %v838
  %v840 = vmul.f32 %v818, 1.442695
  %v841 = vpow.pop %v840
  %v842 = vmul.f32 %v819, 1.442695
  %v843 = vpow.pop %v842
  %v844 = vmul.f32 %v820, 1.442695
  %v845 = vpow.pop %v844
  %v846 = vmul.f32 %v821, 1.442695
  %v847 = vpow.pop %v846
  %v848 = vmul.f32 %v822, 1.442695
  %v849 = vpow.pop %v848
  %v850 = vmul.f32 %v823, 1.442695
  %v851 = vpow.pop %v850
  %v852 = vmul.f32 %v824, 1.442695
  %v853 = vpow.pop %v852
  %v854 = vmul.f32 %v825, 1.442695
  %v855 = vpow.pop %v854
  %v856 = vmul.f32 %v826, 1.442695
  %v857 = vpow.pop %v856
  %v858 = vmul.f32 %v827, 1.442695
  %v859 = vpow.pop %v858
  %v860 = vadd.f32 %v829, 1.0
  %v861 = vadd.f32 %v831, 1.0
  %v862 = vadd.f32 %v833, 1.0
  %v863 = vadd.f32 %v835, 1.0
  %v864 = vadd.f32 %v837, 1.0
  %v865 = vadd.f32 %v839, 1.0
  %v866 = vadd.f32 %v841, 1.0
  %v867 = vadd.f32 %v843, 1.0
  %v868 = vadd.f32 %v845, 1.0
  %v869 = vadd.f32 %v847, 1.0
  %v870 = vadd.f32 %v849, 1.0
  %v871 = vadd.f32 %v851, 1.0
  %v872 = vadd.f32 %v853, 1.0
  %v873 = vadd.f32 %v855, 1.0
  %v874 = vadd.f32 %v857, 1.0
  %v875 = vadd.f32 %v859, 1.0
  %v876 = vrcp.pop %v860
  %v877 = vmul.f32 1.0, %v876
  %v878 = vrcp.pop %v861
  %v879 = vmul.f32 1.0, %v878
  %v880 = vrcp.pop %v862
  %v881 = vmul.f32 1.0, %v880
  %v882 = vrcp.pop %v863
  %v883 = vmul.f32 1.0, %v882
  %v884 = vrcp.pop %v864
  %v885 = vmul.f32 1.0, %v884
  %v886 = vrcp.pop %v865
  %v887 = vmul.f32 1.0, %v886
  %v888 = vrcp.pop %v866
  %v889 = vmul.f32 1.0, %v888
  %v890 = vrcp.pop %v867
  %v891 = vmul.f32 1.0, %v890
  %v892 = vrcp.pop %v868
  %v893 = vmul.f32 1.0, %v892
  %v894 = vrcp.pop %v869
  %v895 = vmul.f32 1.0, %v894
  %v896 = vrcp.pop %v870
  %v897 = vmul.f32 1.0, %v896
  %v898 = vrcp.pop %v871
  %v899 = vmul.f32 1.0, %v898
  %v900 = vrcp.pop %v872
  %v901 = vmul.f32 1.0, %v900
  %v902 = vrcp.pop %v873
  %v903 = vmul.f32 1.0, %v902
  %v904 = vrcp.pop %v874
  %v905 = vmul.f32 1.0, %v904
  %v906 = vrcp.pop %v875
  %v907 = vmul.f32 1.0, %v906
  %vm908 = vcmask 64512
  %909 = vst.msk [vmem:[%s6] sm:$0xff] %vm908, %v877
  %910 = vst.msk [vmem:[%s6 + $0x8] sm:$0xff] %vm908, %v879
  %911 = vst.msk [vmem:[%s6 + $0x10] sm:$0xff] %vm908, %v881
  %912 = vst.msk [vmem:[%s6 + $0x18] sm:$0xff] %vm908, %v883
  %913 = vst.msk [vmem:[%s6 + $0x20] sm:$0xff] %vm908, %v885
  %914 = vst.msk [vmem:[%s6 + $0x28] sm:$0xff] %vm908, %v887
  %915 = vst.msk [vmem:[%s6 + $0x30] sm:$0xff] %vm908, %v889
  %916 = vst.msk [vmem:[%s6 + $0x38] sm:$0xff] %vm908, %v891
  %917 = vst.msk [vmem:[%s6 + $0x40] sm:$0xff] %vm908, %v893
  %918 = vst.msk [vmem:[%s6 + $0x48] sm:$0xff] %vm908, %v895
  %919 = vst.msk [vmem:[%s6 + $0x50] sm:$0xff] %vm908, %v897
  %920 = vst.msk [vmem:[%s6 + $0x58] sm:$0xff] %vm908, %v899
  %921 = vst.msk [vmem:[%s6 + $0x60] sm:$0xff] %vm908, %v901
  %922 = vst.msk [vmem:[%s6 + $0x68] sm:$0xff] %vm908, %v903
  %923 = vst.msk [vmem:[%s6 + $0x70] sm:$0xff] %vm908, %v905
  %924 = vst.msk [vmem:[%s6 + $0x78] sm:$0xff] %vm908, %v907
  // Predicated region
  $region26: #{tpu_custom_call.1} parent=0 // pred_check
    _
  $region27: #{tpu_custom_call.1} parent=0 // pred_check_branch
    %926 = sbr.rel (0) target = $region29
  $region28: #{tpu_custom_call.1} parent=0 // pred_region
    _
  $region29: #{tpu_custom_call.1} parent=0 // pred_fallthru
    _
  // Predicated region
  $region30: #{tpu_custom_call.1} parent=0 // pred_check
    _
  $region31: #{tpu_custom_call.1} parent=0 // pred_check_branch
    %928 = sbr.rel (0) target = $region33
  $region32: #{tpu_custom_call.1} parent=0 // pred_region
    _
  $region33: #{tpu_custom_call.1} parent=0 // pred_fallthru
    _

</llo_original>
